<compile_context>
chip_gen: v5e
topology: v5e:2x2
jax: 0.10.0
libtpu: 0.0.40
codegen_flags: <defaults>
</compile_context>

<pallas_src>
import functools

import jax
import jax.numpy as jnp
from jax.experimental import pallas as pl
from jax.experimental.pallas import tpu as pltpu


def _fc_primnet_kernel(num_layers, x_ref, w_ref, b_ref, o_ref):
    """Fused folded MLP: h = x; h = ReLU(h @ W_i + b_i) ...; out = h @ W_last + b_last."""
    h = x_ref[...]
    for li in range(num_layers):               # statically unrolled, tiny L
        h = jnp.dot(h, w_ref[li], preferred_element_type=jnp.float32) + b_ref[li]
        if li < num_layers - 1:
            h = jnp.maximum(h, 0.0)            # args.actv = ReLU on hidden layers
    o_ref[...] = h                             # lane-dense (tb, 128) unmasked store


def _round_up(x, m):
    return (x + m - 1) // m * m


def fc_primnet_forward(motor_control, params, marker_num, output_normalize=True):
    """params = (motor_std, motor_mean, [(W, b), ...], position_std, position_mean).

    Weights are (in_features, out_features), i.e. y = x @ W + b (transposed
    relative to PyTorch nn.Linear).  Returns (B, marker_num, 3, 1).
    """
    motor_std, motor_mean, layer_params, position_std, position_mean = params
    motor_control = motor_control.astype(jnp.float32)
    B, motor_dim = motor_control.shape
    out_dim = marker_num * 3
    L = len(layer_params)

    # ---- Fold normalize/unnormalize into the first/last Linear (param-prep). ----
    ws = [w.astype(jnp.float32) for (w, _) in layer_params]
    bs = [b.reshape(-1).astype(jnp.float32) for (_, b) in layer_params]

    inv_std = 1.0 / motor_std.astype(jnp.float32)     # same semantics as in-kernel divide
    mean_f32 = motor_mean.astype(jnp.float32)
    ws[0] = ws[0] * inv_std[:, None]
    bs[0] = bs[0] - (mean_f32 * inv_std) @ layer_params[0][0].astype(jnp.float32)

    if output_normalize:
        pstd_vec = jnp.tile(position_std.reshape(3).astype(jnp.float32), marker_num)
        pmean_vec = jnp.tile(position_mean.reshape(3).astype(jnp.float32), marker_num)
        ws[-1] = ws[-1] * pstd_vec[None, :]
        bs[-1] = bs[-1] * pstd_vec + pmean_vec

    # ---- Pack all weights/biases into two lane-dense, zero-padded tensors. ----
    dims = [motor_dim] + [w.shape[1] for w in ws]
    P = _round_up(max(max(dims), 128), 128)           # 128 here

    w_packed = jnp.zeros((L, P, P), jnp.float32)
    b_packed = jnp.zeros((L, 1, P), jnp.float32)
    for li in range(L):
        d_in, d_out = dims[li], dims[li + 1]
        w_packed = w_packed.at[li, :d_in, :d_out].set(ws[li])
        b_packed = b_packed.at[li, 0, :d_out].set(bs[li])

    # ---- Lane-dense, sublane-aligned input block (zero-padded rows/lanes). ----
    tb = 256 if B > 256 else _round_up(B, 8)          # batch tile (multiple of 8)
    B_pad = _round_up(B, tb)
    x_padded = jnp.zeros((B_pad, P), jnp.float32).at[:B, :motor_dim].set(motor_control)

    grid = (B_pad // tb,)                             # (1,) at small batch
    cost = pl.CostEstimate(
        flops=2 * B_pad * L * P * P,
        transcendentals=0,
        bytes_accessed=4 * (x_padded.size + w_packed.size + b_packed.size + B_pad * P),
    )

    flat_out = pl.pallas_call(
        functools.partial(_fc_primnet_kernel, L),
        out_shape=jax.ShapeDtypeStruct((B_pad, P), jnp.float32),
        grid=grid,
        in_specs=[
            pl.BlockSpec((tb, P), lambda i: (i, 0)),       # batch-tiled activations
            pl.BlockSpec((L, P, P), lambda i: (0, 0, 0)),  # weights: resident across grid
            pl.BlockSpec((L, 1, P), lambda i: (0, 0, 0)),  # biases:  resident across grid
        ],
        out_specs=pl.BlockSpec((tb, P), lambda i: (i, 0)),
        compiler_params=pltpu.CompilerParams(dimension_semantics=("parallel",)),
        cost_estimate=cost,
    )(x_padded, w_packed, b_packed)

    # Slice away lane/batch padding; reshape like joint_position.reshape(-1, M, 3, 1).
    return flat_out[:B, :out_dim].reshape(B, marker_num, 3, 1)


def init_params(key, motor_dim, hdim, marker_num):
    """Deterministic parameter init (matches FC_PRIMNET.__init__ shapes).

    Uses non-trivial std/mean buffers so the fold-into-weights path is exercised.
    """
    dims = [motor_dim] + list(hdim) + [marker_num * 3]
    layer_params = []
    for i in range(len(dims) - 1):
        key, kw, kb = jax.random.split(key, 3)
        w = jax.random.normal(kw, (dims[i], dims[i + 1]), jnp.float32) / jnp.sqrt(dims[i])
        b = jax.random.normal(kb, (dims[i + 1],), jnp.float32) * 0.01
        layer_params.append((w, b))
    key, k1, k2, k3, k4 = jax.random.split(key, 5)
    motor_std = 0.5 + jax.random.uniform(k1, (motor_dim,), jnp.float32)
    motor_mean = 0.1 * jax.random.normal(k2, (motor_dim,), jnp.float32)
    position_std = 0.5 + jax.random.uniform(k3, (3, 1), jnp.float32)
    position_mean = 0.1 * jax.random.normal(k4, (3, 1), jnp.float32)
    return (motor_std, motor_mean, layer_params, position_std, position_mean)


if __name__ == "__main__":
    # TODO(synk): optimizer / scheduler / save_weights are training infra, not forward-pass ops.
    batch = 8
    motor_dim = 4
    hdim = (32, 32)
    marker_num = 5

    key = jax.random.PRNGKey(0)
    pkey, xkey = jax.random.split(key)
    params = init_params(pkey, motor_dim, hdim, marker_num)
    motor_control = jax.random.normal(xkey, (batch, motor_dim), jnp.float32)

    joint_position = jax.block_until_ready(
        fc_primnet_forward(motor_control, params, marker_num, output_normalize=True))

    # Pure-JAX reference using the ORIGINAL (un-folded) math from the PyTorch forward.
    motor_std, motor_mean, layer_params, position_std, position_mean = params
    h = (motor_control - motor_mean) / motor_std
    for li, (w, b) in enumerate(layer_params):
        h = h @ w + b
        if li < len(layer_params) - 1:
            h = jnp.maximum(h, 0.0)
    ref = h.reshape(batch, marker_num, 3, 1) * position_std + position_mean

    assert joint_position.shape == (batch, marker_num, 3, 1)
    assert jnp.allclose(joint_position, ref, atol=1e-5, rtol=1e-5)
    print("KERNEL_OK")
</pallas_src>

<mosaic_0001>
module attributes {stable_mosaic.version = 11 : i64} {
  func.func @_fc_primnet_kernel(%arg0: i32, %arg1: memref<8x128xf32, #tpu.memory_space<vmem>>, %arg2: memref<3x128x128xf32, #tpu.memory_space<vmem>>, %arg3: memref<3x1x128xf32, #tpu.memory_space<vmem>>, %arg4: memref<8x128xf32, #tpu.memory_space<vmem>>) attributes {dimension_semantics = [#tpu.dimension_semantics<parallel>], iteration_bounds = array<i64: 1>, scalar_prefetch = 0 : i64, scratch_operands = 0 : i64, tpu.core_type = #tpu.core_type<tc>, window_params = [{transform_indices = @transform_0, window_bounds = array<i64: 8, 128>}, {pipeline_mode = #tpu.pipeline_mode<synchronous>, transform_indices = @transform_1, window_bounds = array<i64: 3, 128, 128>}, {pipeline_mode = #tpu.pipeline_mode<synchronous>, transform_indices = @transform_2, window_bounds = array<i64: 3, 1, 128>}, {transform_indices = @transform_3, window_bounds = array<i64: 8, 128>}]} {
    %c0 = arith.constant 0 : index
    %c0_0 = arith.constant 0 : index
    %0 = vector.load %arg1[%c0, %c0_0] : memref<8x128xf32, #tpu.memory_space<vmem>>, vector<8x128xf32>
    %c0_1 = arith.constant 0 : index
    %c0_2 = arith.constant 0 : index
    %c0_3 = arith.constant 0 : index
    %1 = vector.load %arg2[%c0_1, %c0_2, %c0_3] : memref<3x128x128xf32, #tpu.memory_space<vmem>>, vector<1x128x128xf32>
    %2 = vector.shape_cast %1 : vector<1x128x128xf32> to vector<128x128xf32>
    %cst = arith.constant dense<0.000000e+00> : vector<8x128xf32>
    %3 = tpu.matmul %0, %2, %cst {dimension_numbers = #tpu.dot_dimension_numbers<[1], [0], [0], [1], [0, 0, 1, 1], [], []>} : vector<8x128xf32>, vector<128x128xf32>, vector<8x128xf32> -> vector<8x128xf32>
    %c0_4 = arith.constant 0 : index
    %c0_5 = arith.constant 0 : index
    %c0_6 = arith.constant 0 : index
    %4 = vector.load %arg3[%c0_4, %c0_5, %c0_6] : memref<3x1x128xf32, #tpu.memory_space<vmem>>, vector<1x1x128xf32>
    %5 = vector.shape_cast %4 : vector<1x1x128xf32> to vector<1x128xf32>
    %6 = vector.broadcast %5 : vector<1x128xf32> to vector<8x128xf32>
    %7 = arith.addf %3, %6 : vector<8x128xf32>
    %cst_7 = arith.constant 0.000000e+00 : f32
    %8 = vector.broadcast %cst_7 : f32 to vector<8x128xf32>
    %9 = arith.maximumf %7, %8 : vector<8x128xf32>
    %c1 = arith.constant 1 : index
    %c0_8 = arith.constant 0 : index
    %c0_9 = arith.constant 0 : index
    %10 = vector.load %arg2[%c1, %c0_8, %c0_9] : memref<3x128x128xf32, #tpu.memory_space<vmem>>, vector<1x128x128xf32>
    %11 = vector.shape_cast %10 : vector<1x128x128xf32> to vector<128x128xf32>
    %cst_10 = arith.constant dense<0.000000e+00> : vector<8x128xf32>
    %12 = tpu.matmul %9, %11, %cst_10 {dimension_numbers = #tpu.dot_dimension_numbers<[1], [0], [0], [1], [0, 0, 1, 1], [], []>} : vector<8x128xf32>, vector<128x128xf32>, vector<8x128xf32> -> vector<8x128xf32>
    %c1_11 = arith.constant 1 : index
    %c0_12 = arith.constant 0 : index
    %c0_13 = arith.constant 0 : index
    %13 = vector.load %arg3[%c1_11, %c0_12, %c0_13] : memref<3x1x128xf32, #tpu.memory_space<vmem>>, vector<1x1x128xf32>
    %14 = vector.shape_cast %13 : vector<1x1x128xf32> to vector<1x128xf32>
    %15 = vector.broadcast %14 : vector<1x128xf32> to vector<8x128xf32>
    %16 = arith.addf %12, %15 : vector<8x128xf32>
    %cst_14 = arith.constant 0.000000e+00 : f32
    %17 = vector.broadcast %cst_14 : f32 to vector<8x128xf32>
    %18 = arith.maximumf %16, %17 : vector<8x128xf32>
    %c2 = arith.constant 2 : index
    %c0_15 = arith.constant 0 : index
    %c0_16 = arith.constant 0 : index
    %19 = vector.load %arg2[%c2, %c0_15, %c0_16] : memref<3x128x128xf32, #tpu.memory_space<vmem>>, vector<1x128x128xf32>
    %20 = vector.shape_cast %19 : vector<1x128x128xf32> to vector<128x128xf32>
    %cst_17 = arith.constant dense<0.000000e+00> : vector<8x128xf32>
    %21 = tpu.matmul %18, %20, %cst_17 {dimension_numbers = #tpu.dot_dimension_numbers<[1], [0], [0], [1], [0, 0, 1, 1], [], []>} : vector<8x128xf32>, vector<128x128xf32>, vector<8x128xf32> -> vector<8x128xf32>
    %c2_18 = arith.constant 2 : index
    %c0_19 = arith.constant 0 : index
    %c0_20 = arith.constant 0 : index
    %22 = vector.load %arg3[%c2_18, %c0_19, %c0_20] : memref<3x1x128xf32, #tpu.memory_space<vmem>>, vector<1x1x128xf32>
    %23 = vector.shape_cast %22 : vector<1x1x128xf32> to vector<1x128xf32>
    %24 = vector.broadcast %23 : vector<1x128xf32> to vector<8x128xf32>
    %25 = arith.addf %21, %24 : vector<8x128xf32>
    %c0_21 = arith.constant 0 : index
    %c0_22 = arith.constant 0 : index
    %26 = vector.load %arg4[%c0_21, %c0_22] : memref<8x128xf32, #tpu.memory_space<vmem>>, vector<8x128xf32>
    tpu.vector_store %arg4[%c0_21, %c0_22], %25 {strides = array<i32>} : memref<8x128xf32, #tpu.memory_space<vmem>>, vector<8x128xf32>,
    return
  }
  func.func @transform_0(%arg0: i32) -> (i32, i32) {
    %c0_i32 = arith.constant 0 : i32
    %c0_i32_0 = arith.constant 0 : i32
    return %arg0, %c0_i32 : i32, i32
  }
  func.func @transform_1(%arg0: i32) -> (i32, i32, i32) {
    %c0_i32 = arith.constant 0 : i32
    %c0_i32_0 = arith.constant 0 : i32
    %c0_i32_1 = arith.constant 0 : i32
    %c0_i32_2 = arith.constant 0 : i32
    return %c0_i32, %c0_i32_0, %c0_i32_1 : i32, i32, i32
  }
  func.func @transform_2(%arg0: i32) -> (i32, i32, i32) {
    %c0_i32 = arith.constant 0 : i32
    %c0_i32_0 = arith.constant 0 : i32
    %c0_i32_1 = arith.constant 0 : i32
    %c0_i32_2 = arith.constant 0 : i32
    return %c0_i32, %c0_i32_0, %c0_i32_1 : i32, i32, i32
  }
  func.func @transform_3(%arg0: i32) -> (i32, i32) {
    %c0_i32 = arith.constant 0 : i32
    %c0_i32_0 = arith.constant 0 : i32
    return %arg0, %c0_i32 : i32, i32
  }
}

</mosaic_0001>

<llo_original>
// kernel: tpu_custom_call.1
$region0: #{tpu_custom_call.1}
  #allocation0 [shape = 'u32[]', space=smem, size = 0x4, offset = 0x4, fixed_abs, tag = 'smem constant byte address 0x4 - core index']
  #allocation1 [shape = 'u32[72,128]{1,0:T(1,128)}', space=vmem, size = 0x9000, scoped, tag = 'internal scratch']
  %s0 = inlined_call_operand.hbm [shape: f32[8,128], index: 0, kind: input, shape index: {}]
  %s1 = inlined_call_operand.hbm [shape: f32[3,128,128], index: 1, kind: input, shape index: {}]
  %s2 = inlined_call_operand.hbm [shape: f32[3,1,128], index: 2, kind: input, shape index: {}]
  %s3 = inlined_call_operand.hbm [shape: f32[8,128], index: 3, kind: output, shape index: {}]
  %s4 = sld [smem:[#allocation0]]
  $region34: #{tpu_custom_call.1} parent=0
    _
  %s6 = ssub.s32 1, %s4
  %s7 = scalar_select 0, %s6, %s4
  $region1: #{tpu_custom_call.1} parent=0
    #allocation2 [shape = 'u8[4096]{0}', space=vmem, size = 0x1000, scoped, tag = 'input window, operand 0, single buffered']
    #allocation3 [shape = 's32[1]{0}', space=sflag, size = 0x4, scoped, tag = 'scoped memory for tpu_custom_call.1']
    #allocation4 [shape = 's32[1]{0}', space=sflag, size = 0x4, scoped, tag = 'scoped memory for tpu_custom_call.1']
    #allocation5 [shape = 'u8[196608]{0}', space=vmem, size = 0x30000, scoped, tag = 'input window, operand 1, single buffered']
    #allocation6 [shape = 's32[1]{0}', space=sflag, size = 0x4, scoped, tag = 'scoped memory for tpu_custom_call.1']
    #allocation7 [shape = 'u8[1536]{0}', space=vmem, size = 0x800, scoped, tag = 'input window, operand 2, single buffered']
    #allocation8 [shape = 'u8[4096]{0}', space=vmem, size = 0x1000, scoped, tag = 'output window, operand 0, single buffered']
    %8 = vsyncpa [#allocation3], 0
    %9 = vsyncpa [#allocation6], 0
    %10 = vsyncpa [#allocation4], 0
    // Predicated region
    $region2: #{tpu_custom_call.1} parent=1 // pred_check
      _
    $region3: #{tpu_custom_call.1} parent=1 // pred_check_branch
      %12 = sbr.rel (0) target = $region5
    $region4: #{tpu_custom_call.1} parent=1 // pred_region
      %14 = vsyncadd [#allocation3], 0
      %s16 = sshll.u32 %s0, 4
      %s17 = int_to_ptr.hbm [resolvable:$true] %s16
      %s18 = sshll.u32 [#allocation2], 4
      %s19 = int_to_ptr.vmem [resolvable:$true] %s18
      %21 = dma.hbm_to_vmem [thread:$0]  %s17, 128, %s19, [#allocation3]
    $region5: #{tpu_custom_call.1} parent=1 // pred_fallthru
      _
    // Predicated region
    $region6: #{tpu_custom_call.1} parent=1 // pred_check
      _
    $region7: #{tpu_custom_call.1} parent=1 // pred_check_branch
      %23 = sbr.rel (0) target = $region9
    $region8: #{tpu_custom_call.1} parent=1 // pred_region
      %25 = vsyncadd [#allocation6], 0
      %s26 = sshll.u32 %s1, 4
      %s27 = int_to_ptr.hbm [resolvable:$true] %s26
      %s28 = sshll.u32 [#allocation5], 4
      %s29 = int_to_ptr.vmem [resolvable:$true] %s28
      %34 = dma.hbm_to_vmem [thread:$0]  %s27, 6144, %s29, [#allocation6], 128, 128, 8
    $region9: #{tpu_custom_call.1} parent=1 // pred_fallthru
      _
    // Predicated region
    $region10: #{tpu_custom_call.1} parent=1 // pred_check
      _
    $region11: #{tpu_custom_call.1} parent=1 // pred_check_branch
      %36 = sbr.rel (0) target = $region13
    $region12: #{tpu_custom_call.1} parent=1 // pred_region
      %38 = vsyncadd [#allocation6], 0
      %s39 = sshll.u32 %s2, 4
      %s40 = int_to_ptr.hbm [resolvable:$true] %s39
      %s41 = sshll.u32 [#allocation7], 4
      %s42 = int_to_ptr.vmem [resolvable:$true] %s41
      %47 = dma.hbm_to_vmem [thread:$0]  %s40, 48, %s42, [#allocation6], 16, 16, 1
    $region13: #{tpu_custom_call.1} parent=1 // pred_fallthru
      _
    // Predicated region
    $region14: #{tpu_custom_call.1} parent=1 // pred_check
      _
    $region15: #{tpu_custom_call.1} parent=1 // pred_check_branch
      %49 = sbr.rel (0) target = $region17
    $region16: #{tpu_custom_call.1} parent=1 // pred_region
      %51 = dma.done [#allocation3], 128
    $region17: #{tpu_custom_call.1} parent=1 // pred_fallthru
      _
    // Predicated region
    $region18: #{tpu_custom_call.1} parent=1 // pred_check
      _
    $region19: #{tpu_custom_call.1} parent=1 // pred_check_branch
      %53 = sbr.rel (0) target = $region21
    $region20: #{tpu_custom_call.1} parent=1 // pred_region
      %55 = dma.done [#allocation6], 6144
    $region21: #{tpu_custom_call.1} parent=1 // pred_fallthru
      _
    // Predicated region
    $region22: #{tpu_custom_call.1} parent=1 // pred_check
      _
    $region23: #{tpu_custom_call.1} parent=1 // pred_check_branch
      %57 = sbr.rel (0) target = $region25
    $region24: #{tpu_custom_call.1} parent=1 // pred_region
      %59 = dma.done [#allocation6], 48
    $region25: #{tpu_custom_call.1} parent=1 // pred_fallthru
      _
    %v60 = vld [vmem:[#allocation2] sm:$0xff]
    %v61 = vld [vmem:[#allocation5] sm:$0xff]
    %v62 = vld [vmem:[#allocation5 + $0x8] sm:$0xff]
    %v63 = vld [vmem:[#allocation5 + $0x10] sm:$0xff]
    %v64 = vld [vmem:[#allocation5 + $0x18] sm:$0xff]
    %v65 = vld [vmem:[#allocation5 + $0x20] sm:$0xff]
    %v66 = vld [vmem:[#allocation5 + $0x28] sm:$0xff]
    %v67 = vld [vmem:[#allocation5 + $0x30] sm:$0xff]
    %v68 = vld [vmem:[#allocation5 + $0x38] sm:$0xff]
    %v69 = vld [vmem:[#allocation5 + $0x40] sm:$0xff]
    %v70 = vld [vmem:[#allocation5 + $0x48] sm:$0xff]
    %v71 = vld [vmem:[#allocation5 + $0x50] sm:$0xff]
    %v72 = vld [vmem:[#allocation5 + $0x58] sm:$0xff]
    %v73 = vld [vmem:[#allocation5 + $0x60] sm:$0xff]
    %v74 = vld [vmem:[#allocation5 + $0x68] sm:$0xff]
    %v75 = vld [vmem:[#allocation5 + $0x70] sm:$0xff]
    %v76 = vld [vmem:[#allocation5 + $0x78] sm:$0xff]
    %v77 = vld [vmem:[#allocation7] sm:$0x1]
    %v79 = vperm.slane %v77, 0
    %81 = vmatpush.msra.mxu0 %v76
    %82 = vmatpush.msra.mxu0 %v75
    %83 = vmatpush.msra.mxu0 %v74
    %84 = vmatpush.msra.mxu0 %v73
    %85 = vmatpush.msra.mxu0 %v72
    %86 = vmatpush.msra.mxu0 %v71
    %87 = vmatpush.msra.mxu0 %v70
    %88 = vmatpush.msra.mxu0 %v69
    %89 = vmatpush.msra.mxu0 %v68
    %90 = vmatpush.msra.mxu0 %v67
    %91 = vmatpush.msra.mxu0 %v66
    %92 = vmatpush.msra.mxu0 %v65
    %93 = vmatpush.msra.mxu0 %v64
    %94 = vmatpush.msra.mxu0 %v63
    %95 = vmatpush.msra.mxu0 %v62
    %96 = vmatpush.msra.mxu0 %v61
    %97 = vmatmul.f32.gmra.mxu0 %v60
    %v98 = vpop.f32.mrf.mxu0
    %v99 = vadd.f32 %v79, %v98
    %100 = vdwg.mxu0
    %v101 = vmax.f32 %v99, 0.0
    %s102 = scalar_lea.vmem [#allocation5], 128
    %v103 = vld [vmem:[%s102] sm:$0xff]
    %v104 = vld [vmem:[%s102 + $0x8] sm:$0xff]
    %v105 = vld [vmem:[%s102 + $0x10] sm:$0xff]
    %v106 = vld [vmem:[%s102 + $0x18] sm:$0xff]
    %v107 = vld [vmem:[%s102 + $0x20] sm:$0xff]
    %v108 = vld [vmem:[%s102 + $0x28] sm:$0xff]
    %v109 = vld [vmem:[%s102 + $0x30] sm:$0xff]
    %v110 = vld [vmem:[%s102 + $0x38] sm:$0xff]
    %v111 = vld [vmem:[%s102 + $0x40] sm:$0xff]
    %v112 = vld [vmem:[%s102 + $0x48] sm:$0xff]
    %v113 = vld [vmem:[%s102 + $0x50] sm:$0xff]
    %v114 = vld [vmem:[%s102 + $0x58] sm:$0xff]
    %v115 = vld [vmem:[%s102 + $0x60] sm:$0xff]
    %v116 = vld [vmem:[%s102 + $0x68] sm:$0xff]
    %v117 = vld [vmem:[%s102 + $0x70] sm:$0xff]
    %v118 = vld [vmem:[%s102 + $0x78] sm:$0xff]
    %s119 = scalar_lea.vmem [#allocation7], 1
    %v120 = vld [vmem:[%s119] sm:$0x1]
    %v122 = vperm.slane %v120, 0
    %124 = vmatpush.msra.mxu0 %v118
    %125 = vmatpush.msra.mxu0 %v117
    %126 = vmatpush.msra.mxu0 %v116
    %127 = vmatpush.msra.mxu0 %v115
    %128 = vmatpush.msra.mxu0 %v114
    %129 = vmatpush.msra.mxu0 %v113
    %130 = vmatpush.msra.mxu0 %v112
    %131 = vmatpush.msra.mxu0 %v111
    %132 = vmatpush.msra.mxu0 %v110
    %133 = vmatpush.msra.mxu0 %v109
    %134 = vmatpush.msra.mxu0 %v108
    %135 = vmatpush.msra.mxu0 %v107
    %136 = vmatpush.msra.mxu0 %v106
    %137 = vmatpush.msra.mxu0 %v105
    %138 = vmatpush.msra.mxu0 %v104
    %139 = vmatpush.msra.mxu0 %v103
    %140 = vmatmul.f32.gmra.mxu0 %v101
    %v141 = vpop.f32.mrf.mxu0
    %v142 = vadd.f32 %v122, %v141
    %143 = vdwg.mxu0
    %v144 = vmax.f32 %v142, 0.0
    %s145 = scalar_lea.vmem [#allocation5], 256
    %v146 = vld [vmem:[%s145] sm:$0xff]
    %v147 = vld [vmem:[%s145 + $0x8] sm:$0xff]
    %v148 = vld [vmem:[%s145 + $0x10] sm:$0xff]
    %v149 = vld [vmem:[%s145 + $0x18] sm:$0xff]
    %v150 = vld [vmem:[%s145 + $0x20] sm:$0xff]
    %v151 = vld [vmem:[%s145 + $0x28] sm:$0xff]
    %v152 = vld [vmem:[%s145 + $0x30] sm:$0xff]
    %v153 = vld [vmem:[%s145 + $0x38] sm:$0xff]
    %v154 = vld [vmem:[%s145 + $0x40] sm:$0xff]
    %v155 = vld [vmem:[%s145 + $0x48] sm:$0xff]
    %v156 = vld [vmem:[%s145 + $0x50] sm:$0xff]
    %v157 = vld [vmem:[%s145 + $0x58] sm:$0xff]
    %v158 = vld [vmem:[%s145 + $0x60] sm:$0xff]
    %v159 = vld [vmem:[%s145 + $0x68] sm:$0xff]
    %v160 = vld [vmem:[%s145 + $0x70] sm:$0xff]
    %v161 = vld [vmem:[%s145 + $0x78] sm:$0xff]
    %s162 = scalar_lea.vmem [#allocation7], 2
    %v163 = vld [vmem:[%s162] sm:$0x1]
    %v165 = vperm.slane %v163, 0
    %167 = vmatpush.msra.mxu0 %v161
    %168 = vmatpush.msra.mxu0 %v160
    %169 = vmatpush.msra.mxu0 %v159
    %170 = vmatpush.msra.mxu0 %v158
    %171 = vmatpush.msra.mxu0 %v157
    %172 = vmatpush.msra.mxu0 %v156
    %173 = vmatpush.msra.mxu0 %v155
    %174 = vmatpush.msra.mxu0 %v154
    %175 = vmatpush.msra.mxu0 %v153
    %176 = vmatpush.msra.mxu0 %v152
    %177 = vmatpush.msra.mxu0 %v151
    %178 = vmatpush.msra.mxu0 %v150
    %179 = vmatpush.msra.mxu0 %v149
    %180 = vmatpush.msra.mxu0 %v148
    %181 = vmatpush.msra.mxu0 %v147
    %182 = vmatpush.msra.mxu0 %v146
    %183 = vmatmul.f32.gmra.mxu0 %v144
    %v184 = vpop.f32.mrf.mxu0
    %v185 = vadd.f32 %v165, %v184
    %186 = vdwg.mxu0
    %187 = vst [vmem:[#allocation8] sm:$0xff] %v185
    // Predicated region
    $region26: #{tpu_custom_call.1} parent=1 // pred_check
      _
    $region27: #{tpu_custom_call.1} parent=1 // pred_check_branch
      %189 = sbr.rel (0) target = $region29
    $region28: #{tpu_custom_call.1} parent=1 // pred_region
      %191 = vsyncadd [#allocation4], 0
      %s193 = sshll.u32 [#allocation8], 4
      %s194 = int_to_ptr.vmem [resolvable:$true] %s193
      %s195 = sshll.u32 %s3, 4
      %s196 = int_to_ptr.hbm [resolvable:$true] %s195
      %198 = dma.vmem_to_hbm [thread:$0]  %s194, 128, %s196, [#allocation4]
    $region29: #{tpu_custom_call.1} parent=1 // pred_fallthru
      _
    // Predicated region
    $region30: #{tpu_custom_call.1} parent=1 // pred_check
      _
    $region31: #{tpu_custom_call.1} parent=1 // pred_check_branch
      %200 = sbr.rel (0) target = $region33
    $region32: #{tpu_custom_call.1} parent=1 // pred_region
      %202 = dma.done [#allocation4], 128
    $region33: #{tpu_custom_call.1} parent=1 // pred_fallthru
      _
    %203 = vsyncpa [#allocation3], 1
    %204 = vsyncpa [#allocation6], 1
    %205 = vsyncpa [#allocation4], 1

</llo_original>
